<compile_context>
chip_gen: v7x
topology: tpu7x:2x2x1
jax: 0.10.0
libtpu: 0.0.40
codegen_flags: <defaults>
</compile_context>

<pallas_src>
import functools
import math
import numpy as np
import jax
import jax.numpy as jnp
from jax.experimental import pallas as pl
from jax.experimental.pallas import tpu as pltpu

# ----------------------- module config (defaults of FilterbankFeatures) -------------
SAMPLE_RATE = 8000
WINDOW_SIZE = 0.02
WINDOW_STRIDE = 0.01
WIN_LENGTH = int(SAMPLE_RATE * WINDOW_SIZE)        # 160
HOP_LENGTH = int(SAMPLE_RATE * WINDOW_STRIDE)      # 80
N_FFT = 2 ** math.ceil(math.log2(WIN_LENGTH))      # 256
N_FREQ = N_FFT // 2 + 1                            # 129
NF_PAD = ((N_FREQ + 7) // 8) * 8                   # 136 (sublane-aligned freq rows)
NFILT = 64
PREEMPH = 0.97
DITHER = 1e-5
PAD_TO = 8
LOG_EPS = 1e-20
LOWFREQ = 0.0
HIGHFREQ = SAMPLE_RATE / 2.0

# MXU input dtype for the big DFT matmul (f32 accumulation either way).
# NOTE: bf16 quantizes the framed signal (~3 decimal digits); the 1e-5 dither is
# effectively absorbed for unit-scale audio.  Use jnp.float32 for exact validation.
MATMUL_DTYPE = jnp.bfloat16


def _round_up(v, m):
    return ((v + m - 1) // m) * m


# ----------------------- deterministic parameter construction -----------------------
def _hz_to_mel(freq):
    freq = np.asarray(freq, dtype=np.float64)
    f_sp = 200.0 / 3
    mels = freq / f_sp
    min_log_hz = 1000.0
    min_log_mel = min_log_hz / f_sp
    logstep = np.log(6.4) / 27.0
    return np.where(freq >= min_log_hz,
                    min_log_mel + np.log(np.maximum(freq, 1e-10) / min_log_hz) / logstep,
                    mels)


def _mel_to_hz(mels):
    mels = np.asarray(mels, dtype=np.float64)
    f_sp = 200.0 / 3
    freqs = f_sp * mels
    min_log_hz = 1000.0
    min_log_mel = min_log_hz / f_sp
    logstep = np.log(6.4) / 27.0
    return np.where(mels >= min_log_mel,
                    min_log_hz * np.exp(logstep * (mels - min_log_mel)),
                    freqs)


def mel_filterbank(sr, n_fft, n_mels, fmin, fmax):
    """Slaney-style mel filterbank (matches librosa.filters.mel defaults)."""
    n_freq = n_fft // 2 + 1
    fftfreqs = np.linspace(0.0, sr / 2.0, n_freq)
    mel_f = _mel_to_hz(np.linspace(_hz_to_mel(fmin), _hz_to_mel(fmax), n_mels + 2))
    fdiff = np.diff(mel_f)
    ramps = mel_f[:, None] - fftfreqs[None, :]
    weights = np.zeros((n_mels, n_freq), dtype=np.float64)
    for i in range(n_mels):
        lower = -ramps[i] / fdiff[i]
        upper = ramps[i + 2] / fdiff[i + 1]
        weights[i] = np.maximum(0.0, np.minimum(lower, upper))
    enorm = 2.0 / (mel_f[2:n_mels + 2] - mel_f[:n_mels])
    weights *= enorm[:, None]
    return weights  # float64, (n_mels, n_freq)


def hamming_window(win_length):
    # torch.hamming_window(win_length, periodic=False)
    n = np.arange(win_length, dtype=np.float64)
    return 0.54 - 0.46 * np.cos(2.0 * np.pi * n / (win_length - 1))


def dft_matrices(n_fft, n_freq):
    k = np.arange(n_freq, dtype=np.float64)
    n = np.arange(n_fft, dtype=np.float64)
    ang = 2.0 * np.pi * np.outer(k, n) / n_fft
    return np.cos(ang), np.sin(ang)  # float64, (n_freq, n_fft)


@functools.lru_cache(maxsize=1)
def _build_params():
    """Window-folded, row-stacked real-DFT weight + zero-padded mel filterbank."""
    win = hamming_window(WIN_LENGTH)
    lpad = (N_FFT - WIN_LENGTH) // 2
    win_p = np.pad(win, (lpad, N_FFT - WIN_LENGTH - lpad))            # (N_FFT,)
    cosm, sinm = dft_matrices(N_FFT, N_FREQ)                          # (N_FREQ, N_FFT)
    # Fold the window: (cos * win) @ frames == cos @ (win[:,None] * frames)
    cosw = cosm * win_p[None, :]
    sinw = sinm * win_p[None, :]
    dftw = np.zeros((2 * NF_PAD, N_FFT), dtype=np.float32)
    dftw[:N_FREQ] = cosw
    dftw[NF_PAD:NF_PAD + N_FREQ] = sinw
    fb = np.zeros((NFILT, NF_PAD), dtype=np.float32)
    fb[:, :N_FREQ] = mel_filterbank(SAMPLE_RATE, N_FFT, NFILT, LOWFREQ, HIGHFREQ)
    return dftw, fb


# ----------------------- Pallas kernel ----------------------------------------------
def fbank_kernel(seq_ref, frames_ref, dftw_ref, fb_ref, out_ref):
    b = pl.program_id(0)
    t = pl.program_id(1)
    t_tile = out_ref.shape[2]
    nf_pad = dftw_ref.shape[0] // 2

    # Single MXU sweep: windowed real-DFT with real rows stacked over imag rows.
    # frames_ref block: (1, N_FFT, T_TILE); dftw_ref: (2*NF_PAD, N_FFT)
    d = jnp.dot(dftw_ref[...], frames_ref[0],
                preferred_element_type=jnp.float32)                    # (2*NF_PAD, T_TILE)
    real = d[:nf_pad]
    imag = d[nf_pad:]
    power = real * real + imag * imag                                  # |STFT|^2, f32

    mel = jnp.dot(fb_ref[...], power, preferred_element_type=jnp.float32)  # (NFILT, T_TILE)
    mel = jnp.log(mel + LOG_EPS)

    # sequence-length mask (also zeroes the pad_to / lane-padding region)
    col = t * t_tile + jax.lax.broadcasted_iota(jnp.int32, mel.shape, 1)
    out_ref[0] = jnp.where(col >= seq_ref[b], jnp.float32(0.0), mel)


# ----------------------- wrapper -----------------------------------------------------
def filterbank_features(x, seq_len, dither_key, t_tile_max=512):
    """x: (B, L) float32 raw waveform; seq_len: (B,) valid sample counts."""
    B, L = x.shape

    # get_seq_len: ceil(seq_len / hop)
    seq_frames = jnp.ceil(seq_len.astype(jnp.float32) / HOP_LENGTH).astype(jnp.int32)

    x = x.astype(jnp.float32)
    # dither
    if DITHER > 0:
        x = x + DITHER * jax.random.normal(dither_key, x.shape, jnp.float32)
    # pre-emphasis
    x = jnp.concatenate([x[:, :1], x[:, 1:] - PREEMPH * x[:, :-1]], axis=1)

    # STFT framing (torch.stft: center=True, reflect pad by n_fft//2,
    # window zero-padded to n_fft -- the window itself is folded into dftw).
    pad = N_FFT // 2
    xp = jnp.pad(x, ((0, 0), (pad, pad)), mode="reflect")
    T = 1 + L // HOP_LENGTH
    # gather index built already transposed -> frames come out (B, N_FFT, T) directly
    idx = np.arange(N_FFT)[:, None] + np.arange(T)[None, :] * HOP_LENGTH
    frames = xp[:, idx]                                                # (B, N_FFT, T)

    # PyTorch pad_to>0 semantics of the reference: pad by (pad_to - T % pad_to),
    # i.e. a full pad_to even when T % pad_to == 0.
    T_OUT = T + (PAD_TO - T % PAD_TO)

    # Kernel-side time padding: lane-dense (multiple of 128), tiled by T_TILE.
    T_LANE = _round_up(T_OUT, 128)
    T_TILE = min(t_tile_max, T_LANE)
    T_KER = _round_up(T_LANE, T_TILE)
    frames = jnp.pad(frames, ((0, 0), (0, 0), (0, T_KER - T))).astype(MATMUL_DTYPE)

    dftw_np, fb_np = _build_params()
    dftw = jnp.asarray(dftw_np, MATMUL_DTYPE)   # windowed, stacked real-DFT weight
    fb = jnp.asarray(fb_np, jnp.float32)        # mel filterbank (f32, small matmul)

    out_full = pl.pallas_call(
        fbank_kernel,
        out_shape=jax.ShapeDtypeStruct((B, NFILT, T_KER), jnp.float32),
        grid_spec=pltpu.PrefetchScalarGridSpec(
            num_scalar_prefetch=1,
            grid=(B, T_KER // T_TILE),
            in_specs=[
                pl.BlockSpec((1, N_FFT, T_TILE), lambda b, t, sl: (b, 0, t)),   # frames tile
                pl.BlockSpec((2 * NF_PAD, N_FFT), lambda b, t, sl: (0, 0)),     # stacked DFT (resident)
                pl.BlockSpec((NFILT, NF_PAD), lambda b, t, sl: (0, 0)),         # mel filterbank (resident)
            ],
            out_specs=pl.BlockSpec((1, NFILT, T_TILE), lambda b, t, sl: (b, 0, t)),
        ),
        compiler_params=pltpu.CompilerParams(
            dimension_semantics=("parallel", "parallel")),
    )(seq_frames, frames, dftw, fb)

    # Trim kernel lane-padding back to the reference output length.
    return out_full[:, :, :T_OUT]
    # NOTE: self.normalize is never applied in the reference forward(); frame_splicing=1 is a no-op.
    # TODO(synk): in-kernel framing (DMA raw audio spans, build frames on-chip) would cut
    #             HBM input bytes ~3x further; kept host-side for now.


# ----------------------- demo --------------------------------------------------------
if __name__ == "__main__":
    key = jax.random.PRNGKey(0)
    k_sig, k_dither = jax.random.split(key)

    B, L = 2, 800                                   # 0.1 s of 8 kHz audio per batch element
    x = jax.random.normal(k_sig, (B, L), jnp.float32)
    seq_len = jnp.array([800, 640], jnp.int32)      # valid sample counts per batch element

    out = filterbank_features(x, seq_len, k_dither)
    jax.block_until_ready(out)
    assert out.shape == (B, NFILT, 16), out.shape   # T=11 frames padded to 16 (pad_to=8 semantics)
    print("KERNEL_OK")
</pallas_src>

<mosaic_0001>
module attributes {stable_mosaic.version = 11 : i64} {
  func.func @fbank_kernel(%arg0: i32, %arg1: i32, %arg2: memref<2xi32, #tpu.memory_space<smem>>, %arg3: memref<1x256x128xbf16, #tpu.memory_space<vmem>>, %arg4: memref<272x256xbf16, #tpu.memory_space<vmem>>, %arg5: memref<64x136xf32, #tpu.memory_space<vmem>>, %arg6: memref<1x64x128xf32, #tpu.memory_space<vmem>>) attributes {dimension_semantics = [#tpu.dimension_semantics<parallel>, #tpu.dimension_semantics<parallel>], iteration_bounds = array<i64: 2, 1>, scalar_prefetch = 1 : i64, scratch_operands = 0 : i64, tpu.core_type = #tpu.core_type<tc>, window_params = [{transform_indices = @transform_0, window_bounds = array<i64: 1, 256, 128>}, {pipeline_mode = #tpu.pipeline_mode<synchronous>, transform_indices = @transform_1, window_bounds = array<i64: 272, 256>}, {pipeline_mode = #tpu.pipeline_mode<synchronous>, transform_indices = @transform_2, window_bounds = array<i64: 64, 136>}, {transform_indices = @transform_3, window_bounds = array<i64: 1, 64, 128>}]} {
    %c0 = arith.constant 0 : index
    %c0_0 = arith.constant 0 : index
    %0 = vector.load %arg4[%c0, %c0_0] : memref<272x256xbf16, #tpu.memory_space<vmem>>, vector<272x256xbf16>
    %c0_1 = arith.constant 0 : index
    %c0_2 = arith.constant 0 : index
    %c0_3 = arith.constant 0 : index
    %1 = vector.load %arg3[%c0_1, %c0_2, %c0_3] : memref<1x256x128xbf16, #tpu.memory_space<vmem>>, vector<1x256x128xbf16>
    %2 = vector.shape_cast %1 : vector<1x256x128xbf16> to vector<256x128xbf16>
    %cst = arith.constant dense<0.000000e+00> : vector<272x128xf32>
    %3 = tpu.matmul %0, %2, %cst {dimension_numbers = #tpu.dot_dimension_numbers<[1], [0], [0], [1], [0, 0, 1, 1], [], []>} : vector<272x256xbf16>, vector<256x128xbf16>, vector<272x128xf32> -> vector<272x128xf32>
    %4 = vector.extract_strided_slice %3 {offsets = [0, 0], sizes = [136, 128], strides = [1, 1]} : vector<272x128xf32> to vector<136x128xf32>
    %5 = vector.extract_strided_slice %3 {offsets = [136, 0], sizes = [136, 128], strides = [1, 1]} : vector<272x128xf32> to vector<136x128xf32>
    %6 = arith.mulf %4, %4 : vector<136x128xf32>
    %7 = arith.mulf %5, %5 : vector<136x128xf32>
    %8 = arith.addf %6, %7 : vector<136x128xf32>
    %c0_4 = arith.constant 0 : index
    %c0_5 = arith.constant 0 : index
    %9 = vector.load %arg5[%c0_4, %c0_5] : memref<64x136xf32, #tpu.memory_space<vmem>>, vector<64x136xf32>
    %cst_6 = arith.constant dense<0.000000e+00> : vector<64x128xf32>
    %10 = tpu.matmul %9, %8, %cst_6 {dimension_numbers = #tpu.dot_dimension_numbers<[1], [0], [0], [1], [0, 0, 1, 1], [], []>} : vector<64x136xf32>, vector<136x128xf32>, vector<64x128xf32> -> vector<64x128xf32>
    %cst_7 = arith.constant 9.99999968E-21 : f32
    %11 = vector.broadcast %cst_7 : f32 to vector<64x128xf32>
    %12 = arith.addf %10, %11 : vector<64x128xf32>
    %13 = math.log %12 : vector<64x128xf32>
    %c128_i32 = arith.constant 128 : i32
    %14 = arith.muli %arg1, %c128_i32 : i32
    %15 = tpu.iota {dimensions = array<i32: 1>} : vector<64x128xi32>
    %16 = vector.broadcast %14 : i32 to vector<64x128xi32>
    %17 = arith.addi %16, %15 : vector<64x128xi32>
    %18 = arith.index_cast %arg0 : i32 to index
    %19 = memref.load %arg2[%18] : memref<2xi32, #tpu.memory_space<smem>>
    %20 = vector.broadcast %19 : i32 to vector<64x128xi32>
    %21 = arith.cmpi sge, %17, %20 : vector<64x128xi32>
    %cst_8 = arith.constant 0.000000e+00 : f32
    %22 = vector.broadcast %cst_8 : f32 to vector<64x128xf32>
    %23 = arith.select %21, %22, %13 : vector<64x128xi1>, vector<64x128xf32>
    %c0_9 = arith.constant 0 : index
    %c0_10 = arith.constant 0 : index
    %c0_11 = arith.constant 0 : index
    %24 = vector.load %arg6[%c0_9, %c0_10, %c0_11] : memref<1x64x128xf32, #tpu.memory_space<vmem>>, vector<1x64x128xf32>
    %25 = vector.shape_cast %24 : vector<1x64x128xf32> to vector<64x128xf32>
    %26 = vector.shape_cast %23 : vector<64x128xf32> to vector<1x64x128xf32>
    tpu.vector_store %arg6[%c0_9, %c0_10, %c0_11], %26 {strides = array<i32>} : memref<1x64x128xf32, #tpu.memory_space<vmem>>, vector<1x64x128xf32>,
    return
  }
  func.func @transform_0(%arg0: i32, %arg1: i32, %arg2: memref<2xi32, #tpu.memory_space<smem>>) -> (i32, i32, i32) {
    %c0_i32 = arith.constant 0 : i32
    %c0_i32_0 = arith.constant 0 : i32
    return %arg0, %c0_i32, %arg1 : i32, i32, i32
  }
  func.func @transform_1(%arg0: i32, %arg1: i32, %arg2: memref<2xi32, #tpu.memory_space<smem>>) -> (i32, i32) {
    %c0_i32 = arith.constant 0 : i32
    %c0_i32_0 = arith.constant 0 : i32
    %c0_i32_1 = arith.constant 0 : i32
    return %c0_i32, %c0_i32_0 : i32, i32
  }
  func.func @transform_2(%arg0: i32, %arg1: i32, %arg2: memref<2xi32, #tpu.memory_space<smem>>) -> (i32, i32) {
    %c0_i32 = arith.constant 0 : i32
    %c0_i32_0 = arith.constant 0 : i32
    %c0_i32_1 = arith.constant 0 : i32
    return %c0_i32, %c0_i32_0 : i32, i32
  }
  func.func @transform_3(%arg0: i32, %arg1: i32, %arg2: memref<2xi32, #tpu.memory_space<smem>>) -> (i32, i32, i32) {
    %c0_i32 = arith.constant 0 : i32
    %c0_i32_0 = arith.constant 0 : i32
    return %arg0, %c0_i32, %arg1 : i32, i32, i32
  }
}

</mosaic_0001>

<llo_original>
// kernel: tpu_custom_call.1
$region0: #{tpu_custom_call.1}
  #allocation0 [shape = 'u32[]', space=smem, size = 0x4, offset = 0x4, fixed_abs, tag = 'smem constant byte address 0x4 - core index']
  #allocation1 [shape = 'u32[144,128]{1,0:T(1,128)}', space=vmem, size = 0x12000, scoped, tag = 'internal scratch']
  #allocation2 [shape = 's32[1]{0}', space=sflag, size = 0x4, scoped, tag = 'scoped memory for tpu_custom_call.1']
  #allocation3 [shape = 'u8[512]{0}', space=smem, size = 0x200, scoped, tag = 'prefetched SMEM operand 0']
  %s0 = inlined_call_operand.hbm [shape: s32[2], index: 0, kind: input, shape index: {}]
  %s1 = inlined_call_operand.hbm [shape: bf16[2,256,128], index: 1, kind: input, shape index: {}]
  %s2 = inlined_call_operand.hbm [shape: bf16[272,256], index: 2, kind: input, shape index: {}]
  %s3 = inlined_call_operand.hbm [shape: f32[64,136], index: 3, kind: input, shape index: {}]
  %s4 = inlined_call_operand.hbm [shape: f32[2,64,128], index: 4, kind: output, shape index: {}]
  %s5 = sld [smem:[#allocation0]]
  $region57: #{tpu_custom_call.1} parent=0
    _
  %s7 = ssub.s32 1, %s5
  %s8 = scalar_select 0, %s7, %s5
  %10 = dma.hbm_to_smem %s0, 16, [#allocation3], [#allocation2]
  %11 = dma.done [#allocation2], 16
  %12 = sfence
  $region1: #{tpu_custom_call.1} parent=0
    #allocation4 [shape = 'u8[131072]{0}', space=vmem, size = 0x20000, scoped, tag = 'input window, operand 1']
    #allocation5 [shape = 's32[2]{0}', space=sflag, size = 0x8, scoped, tag = 'scoped memory for tpu_custom_call.1']
    #allocation6 [shape = 's32[2]{0}', space=sflag, size = 0x8, scoped, tag = 'scoped memory for tpu_custom_call.1']
    #allocation7 [shape = 'u8[139264]{0}', space=vmem, size = 0x22000, scoped, tag = 'input window, operand 2, single buffered']
    #allocation8 [shape = 's32[1]{0}', space=sflag, size = 0x4, scoped, tag = 'scoped memory for tpu_custom_call.1']
    #allocation9 [shape = 'u8[65536]{0}', space=vmem, size = 0x10000, scoped, tag = 'input window, operand 3, single buffered']
    #allocation10 [shape = 'u8[65536]{0}', space=vmem, size = 0x10000, scoped, tag = 'output window, operand 0']
    %13 = vsyncpa [#allocation5], 0
    %s14 = scalar_lea.sflag [#allocation5], 1
    %15 = vsyncpa %s14, 0
    %16 = vsyncpa [#allocation8], 0
    %17 = vsyncpa [#allocation6], 0
    %s18 = scalar_lea.sflag [#allocation6], 1
    %19 = vsyncpa %s18, 0
    loop: start=0, step=1, limit=4
    $region2: #{tpu_custom_call.1} parent=1 // loop_pre_header
      _
    $region3: #{tpu_custom_call.1} parent=1 // loop_header
      %s21 = sphi 0, %s25
      %p22 = scmp.ge.s32.totalorder %s21, 4
      %s28 = sphi 0, %s40
      %s29 = sphi 0, %s36
      %s30 = sphi 0, %s28
      %s31 = sphi 0, %s29
      %s32 = sphi 0, %s30
      %s33 = sphi 0, %s31
      %s45 = sphi 0, %s47
      %s48 = sphi 0, %s45
      %s49 = sphi 0, %s48
      %s65 = sphi 0, %s49
      %s69 = sphi 0, %s69
      %s71 = sphi 0, %s69
      %s72 = sphi 0, %s71
      %s86 = sphi 0, %s72
      %s90 = sphi 0, %s90
      %s92 = sphi 0, %s90
      %s93 = sphi 0, %s92
      %s107 = sphi 0, %s93
      %s115 = sphi 0, %s117
      %s118 = sphi 0, %s115
      %s119 = sphi 0, %s118
      %s135 = sphi 0, %s119
    $region4: #{tpu_custom_call.1} parent=1 // loop_header_branch
      %24 = sbr.rel (%p22) target = $region8
    $region5: #{tpu_custom_call.1} parent=1 // loop_body
      %s26 = ssub.s32 %s21, 1
      %s27 = ssub.s32 %s21, 2
      %s34 = sadd.s32 1, %s29
      %p35 = scmp.ge.s32.totalorder %s34, 1
      %s36 = scalar_select %p35, 0, %s34
      %s37 = sadd.s32 1, %s28
      %s38 = scalar_select %p35, %s37, %s28
      %p39 = scmp.ge.s32.totalorder %s38, 2
      %s40 = scalar_select %p39, 0, %s38
      %s41 = ssub.s32 %s28, %s40
      %s42 = ssub.s32 %s29, %s36
      %s43 = sor.u32 %s41, %s42
      %p44 = scmp.eq.s32.totalorder %s43, 0
      %s46 = sadd.s32 %s45, 1
      %s47 = scalar_select %p44, %s45, %s46
      %p50 = pneg %p44
      %p51 = scmp.eq.s32.totalorder %s21, 1
      %p52 = por %p50, %p51
      %p53 = scmp.ne.s32.totalorder %s45, %s48
      %p54 = scmp.eq.s32.totalorder %s21, 0
      %p55 = por %p53, %p54
      %p56 = scmp.ne.s32.totalorder %s45, %s48
      %p57 = scmp.eq.s32.totalorder %s26, 1
      %p58 = por %p56, %p57
      %p59 = scmp.ne.s32.totalorder %s48, %s49
      %p60 = scmp.eq.s32.totalorder %s26, 0
      %p61 = por %p59, %p60
      %p62 = scmp.ne.s32.totalorder %s48, %s49
      %p63 = scmp.eq.s32.totalorder %s27, 1
      %p64 = por %p62, %p63
      %p66 = scmp.ne.s32.totalorder %s49, %s65
      %p67 = scmp.eq.s32.totalorder %s27, 0
      %p68 = por %p66, %p67
      %s70 = sadd.s32 %s69, 1
      %p73 = scmp.eq.s32.totalorder %s21, 1
      %p74 = scmp.ne.s32.totalorder %s69, %s71
      %p75 = scmp.eq.s32.totalorder %s21, 0
      %p76 = por %p74, %p75
      %p77 = scmp.ne.s32.totalorder %s69, %s71
      %p78 = scmp.eq.s32.totalorder %s26, 1
      %p79 = por %p77, %p78
      %p80 = scmp.ne.s32.totalorder %s71, %s72
      %p81 = scmp.eq.s32.totalorder %s26, 0
      %p82 = por %p80, %p81
      %p83 = scmp.ne.s32.totalorder %s71, %s72
      %p84 = scmp.eq.s32.totalorder %s27, 1
      %p85 = por %p83, %p84
      %p87 = scmp.ne.s32.totalorder %s72, %s86
      %p88 = scmp.eq.s32.totalorder %s27, 0
      %p89 = por %p87, %p88
      %s91 = sadd.s32 %s90, 1
      %p94 = scmp.eq.s32.totalorder %s21, 1
      %p95 = scmp.ne.s32.totalorder %s90, %s92
      %p96 = scmp.eq.s32.totalorder %s21, 0
      %p97 = por %p95, %p96
      %p98 = scmp.ne.s32.totalorder %s90, %s92
      %p99 = scmp.eq.s32.totalorder %s26, 1
      %p100 = por %p98, %p99
      %p101 = scmp.ne.s32.totalorder %s92, %s93
      %p102 = scmp.eq.s32.totalorder %s26, 0
      %p103 = por %p101, %p102
      %p104 = scmp.ne.s32.totalorder %s92, %s93
      %p105 = scmp.eq.s32.totalorder %s27, 1
      %p106 = por %p104, %p105
      %p108 = scmp.ne.s32.totalorder %s93, %s107
      %p109 = scmp.eq.s32.totalorder %s27, 0
      %p110 = por %p108, %p109
      %s111 = ssub.s32 %s28, %s40
      %s112 = ssub.s32 %s29, %s36
      %s113 = sor.u32 %s111, %s112
      %p114 = scmp.eq.s32.totalorder %s113, 0
      %s116 = sadd.s32 %s115, 1
      %s117 = scalar_select %p114, %s115, %s116
      %p120 = pneg %p114
      %p121 = scmp.eq.s32.totalorder %s21, 1
      %p122 = por %p120, %p121
      %p123 = scmp.ne.s32.totalorder %s115, %s118
      %p124 = scmp.eq.s32.totalorder %s21, 0
      %p125 = por %p123, %p124
      %p126 = scmp.ne.s32.totalorder %s115, %s118
      %p127 = scmp.eq.s32.totalorder %s26, 1
      %p128 = por %p126, %p127
      %p129 = scmp.ne.s32.totalorder %s118, %s119
      %p130 = scmp.eq.s32.totalorder %s26, 0
      %p131 = por %p129, %p130
      %p132 = scmp.ne.s32.totalorder %s118, %s119
      %p133 = scmp.eq.s32.totalorder %s27, 1
      %p134 = por %p132, %p133
      %p136 = scmp.ne.s32.totalorder %s119, %s135
      %p137 = scmp.eq.s32.totalorder %s27, 0
      %p138 = por %p136, %p137
      %p139 = scmp.le.s32.totalorder 1, %s21
      %p140 = scmp.lt.s32.totalorder %s21, 3
      %p141 = pnand %p139, %p140
      %p142 = pneg %p141
      // Predicated region
      $region9: #{tpu_custom_call.1} parent=5 // pred_check
        _
      $region10: #{tpu_custom_call.1} parent=5 // pred_check_branch
        %144 = sbr.rel (%p141) target = $region12
      $region11: #{tpu_custom_call.1} parent=5 // pred_region
        %s145 = ssub.s32 %s21, 1
        // Predicated region
        $region13: #{tpu_custom_call.1} parent=11 // pred_check
          %p146 = pneg %p82
        $region14: #{tpu_custom_call.1} parent=11 // pred_check_branch
          %148 = sbr.rel (%p146) target = $region16
        $region15: #{tpu_custom_call.1} parent=11 // pred_region
          %s150 = ssub.s32 4352, 4352
          %151 = vsyncadd [#allocation8], %s150
          %s152 = sshll.u32 [#allocation7], 4
          %s153 = int_to_ptr.vmem [resolvable:$true] %s152
          %158 = dma.hbm_to_vmem [thread:$0]  %s2, 4352, %s153, [#allocation8], 128, 128, 8
        $region16: #{tpu_custom_call.1} parent=11 // pred_fallthru
          _
        // Predicated region
        $region17: #{tpu_custom_call.1} parent=11 // pred_check
          %p159 = pneg %p103
        $region18: #{tpu_custom_call.1} parent=11 // pred_check_branch
          %161 = sbr.rel (%p159) target = $region20
        $region19: #{tpu_custom_call.1} parent=11 // pred_region
          %s163 = ssub.s32 2048, 2048
          %164 = vsyncadd [#allocation8], %s163
          %s165 = sshll.u32 [#allocation9], 4
          %s166 = int_to_ptr.vmem [resolvable:$true] %s165
          %171 = dma.hbm_to_vmem [thread:$0]  %s3, 2048, %s166, [#allocation8], 256, 256, 16
        $region20: #{tpu_custom_call.1} parent=11 // pred_fallthru
          _
      $region12: #{tpu_custom_call.1} parent=5 // pred_fallthru
        _
      %p172 = scmp.lt.s32.totalorder %s21, 2
      // Predicated region
      $region21: #{tpu_custom_call.1} parent=5 // pred_check
        %p173 = pneg %p172
      $region22: #{tpu_custom_call.1} parent=5 // pred_check_branch
        %175 = sbr.rel (%p173) target = $region24
      $region23: #{tpu_custom_call.1} parent=5 // pred_region
        // Predicated region
        $region25: #{tpu_custom_call.1} parent=23 // pred_check
          %p176 = pneg %p55
        $region26: #{tpu_custom_call.1} parent=23 // pred_check_branch
          %178 = sbr.rel (%p176) target = $region28
        $region27: #{tpu_custom_call.1} parent=23 // pred_region
          %s179 = sand.u32 %s45, 1
          %s180 = scalar_lea.sflag [#allocation5], %s179
          %s181 = sand.u32 %s45, 1
          %s182 = smul.addr %s181, 128
          %s183 = scalar_lea.vmem [#allocation4], %s182
          %s185 = ssub.s32 2048, 2048
          %186 = vsyncadd %s180, %s185
          %s187 = smul.addr %s28, 32
          %s188 = sadd.s32 %s29, %s187
          %s189 = smul.addr %s188, 64
          %s190 = scalar_lea.hbm %s1, %s189
          %s191 = sshll.u32 %s183, 4
          %s192 = int_to_ptr.vmem [resolvable:$true] %s191
          %197 = dma.hbm_to_vmem [thread:$0]  %s190, 2048, %s192, %s180, 64, 64, 4
        $region28: #{tpu_custom_call.1} parent=23 // pred_fallthru
          _
      $region24: #{tpu_custom_call.1} parent=5 // pred_fallthru
        _
      %p198 = scmp.le.s32.totalorder 1, %s21
      %p199 = scmp.lt.s32.totalorder %s21, 3
      %p200 = pnand %p198, %p199
      %p201 = pneg %p200
      // Predicated region
      $region29: #{tpu_custom_call.1} parent=5 // pred_check
        _
      $region30: #{tpu_custom_call.1} parent=5 // pred_check_branch
        %203 = sbr.rel (%p200) target = $region32
      $region31: #{tpu_custom_call.1} parent=5 // pred_region
        %s204 = ssub.s32 %s21, 1
        %s205 = sand.u32 %s48, 1
        %s206 = scalar_lea.sflag [#allocation5], %s205
        %s207 = sand.u32 %s48, 1
        %s208 = smul.addr %s207, 128
        %s209 = scalar_lea.vmem [#allocation4], %s208
        // Predicated region
        $region33: #{tpu_custom_call.1} parent=31 // pred_check
          %p210 = pneg %p61
        $region34: #{tpu_custom_call.1} parent=31 // pred_check_branch
          %212 = sbr.rel (%p210) target = $region36
        $region35: #{tpu_custom_call.1} parent=31 // pred_region
          %213 = dma.done %s206, 2048
        $region36: #{tpu_custom_call.1} parent=31 // pred_fallthru
          _
        // Predicated region
        $region37: #{tpu_custom_call.1} parent=31 // pred_check
          %p214 = pneg %p82
        $region38: #{tpu_custom_call.1} parent=31 // pred_check_branch
          %216 = sbr.rel (%p214) target = $region40
        $region39: #{tpu_custom_call.1} parent=31 // pred_region
          %217 = dma.done [#allocation8], 4352
        $region40: #{tpu_custom_call.1} parent=31 // pred_fallthru
          _
        // Predicated region
        $region41: #{tpu_custom_call.1} parent=31 // pred_check
          %p218 = pneg %p103
        $region42: #{tpu_custom_call.1} parent=31 // pred_check_branch
          %220 = sbr.rel (%p218) target = $region44
        $region43: #{tpu_custom_call.1} parent=31 // pred_region
          %221 = dma.done [#allocation8], 2048
        $region44: #{tpu_custom_call.1} parent=31 // pred_fallthru
          _
        %s222 = sand.u32 %s48, 1
        %s223 = scalar_lea.sflag [#allocation5], %s222
        %s224 = sand.u32 %s48, 1
        %s225 = smul.addr %s224, 128
        %s226 = scalar_lea.vmem [#allocation4], %s225
        %p227 = pneg %p61
        %p228 = pneg %p58
        %p229 = pneg %p82
        %p230 = pneg %p79
        %p231 = pneg %p103
        %p232 = pneg %p100
        %p233 = pneg %p131
        %p234 = pneg %p128
        %s235 = sand.u32 %s118, 1
        %s236 = scalar_lea.sflag [#allocation6], %s235
        %s237 = sand.u32 %s118, 1
        %s238 = smul.addr %s237, 64
        %s239 = scalar_lea.vmem [#allocation10], %s238
        %v241 = vld [vmem:[#allocation7] sm:$0xff]
        %v242 = vld [vmem:[#allocation7 + $0x8] sm:$0xff]
        %v243 = vld [vmem:[#allocation7 + $0x10] sm:$0xff]
        %v244 = vld [vmem:[#allocation7 + $0x18] sm:$0xff]
        %v245 = vld [vmem:[#allocation7 + $0x20] sm:$0xff]
        %v246 = vld [vmem:[#allocation7 + $0x28] sm:$0xff]
        %v247 = vld [vmem:[#allocation7 + $0x30] sm:$0xff]
        %v248 = vld [vmem:[#allocation7 + $0x38] sm:$0xff]
        %v249 = vld [vmem:[#allocation7 + $0x40] sm:$0xff]
        %v250 = vld [vmem:[#allocation7 + $0x48] sm:$0xff]
        %v251 = vld [vmem:[#allocation7 + $0x50] sm:$0xff]
        %v252 = vld [vmem:[#allocation7 + $0x58] sm:$0xff]
        %v253 = vld [vmem:[#allocation7 + $0x60] sm:$0xff]
        %v254 = vld [vmem:[#allocation7 + $0x68] sm:$0xff]
        %v255 = vld [vmem:[#allocation7 + $0x70] sm:$0xff]
        %v256 = vld [vmem:[#allocation7 + $0x78] sm:$0xff]
        %v257 = vld [vmem:[#allocation7 + $0x80] sm:$0xff]
        %v258 = vld [vmem:[#allocation7 + $0x88] sm:$0xff]
        %v259 = vld [vmem:[#allocation7 + $0x90] sm:$0xff]
        %v260 = vld [vmem:[#allocation7 + $0x98] sm:$0xff]
        %v261 = vld [vmem:[#allocation7 + $0xa0] sm:$0xff]
        %v262 = vld [vmem:[#allocation7 + $0xa8] sm:$0xff]
        %v263 = vld [vmem:[#allocation7 + $0xb0] sm:$0xff]
        %v264 = vld [vmem:[#allocation7 + $0xb8] sm:$0xff]
        %v265 = vld [vmem:[#allocation7 + $0xc0] sm:$0xff]
        %v266 = vld [vmem:[#allocation7 + $0xc8] sm:$0xff]
        %v267 = vld [vmem:[#allocation7 + $0xd0] sm:$0xff]
        %v268 = vld [vmem:[#allocation7 + $0xd8] sm:$0xff]
        %v269 = vld [vmem:[#allocation7 + $0xe0] sm:$0xff]
        %v270 = vld [vmem:[#allocation7 + $0xe8] sm:$0xff]
        %v271 = vld [vmem:[#allocation7 + $0xf0] sm:$0xff]
        %v272 = vld [vmem:[#allocation7 + $0xf8] sm:$0xff]
        %v273 = vld [vmem:[#allocation7 + $0x100] sm:$0xff]
        %v274 = vld [vmem:[#allocation7 + $0x108] sm:$0xff]
        %v275 = vld [vmem:[%s209] sm:$0xf]
        %v276 = vld [vmem:[%s209 + $0x4] sm:$0xf]
        %v277 = vld [vmem:[%s209 + $0x8] sm:$0xf]
        %v278 = vld [vmem:[%s209 + $0xc] sm:$0xf]
        %v279 = vld [vmem:[%s209 + $0x10] sm:$0xf]
        %v280 = vld [vmem:[%s209 + $0x14] sm:$0xf]
        %v281 = vld [vmem:[%s209 + $0x18] sm:$0xf]
        %v282 = vld [vmem:[%s209 + $0x1c] sm:$0xf]
        %v283 = vld [vmem:[%s209 + $0x20] sm:$0xf]
        %v284 = vld [vmem:[%s209 + $0x24] sm:$0xf]
        %v285 = vld [vmem:[%s209 + $0x28] sm:$0xf]
        %v286 = vld [vmem:[%s209 + $0x2c] sm:$0xf]
        %v287 = vld [vmem:[%s209 + $0x30] sm:$0xf]
        %v288 = vld [vmem:[%s209 + $0x34] sm:$0xf]
        %v289 = vld [vmem:[%s209 + $0x38] sm:$0xf]
        %v290 = vld [vmem:[%s209 + $0x3c] sm:$0xf]
        %v291 = vld [vmem:[%s209 + $0x40] sm:$0xf]
        %v292 = vld [vmem:[%s209 + $0x44] sm:$0xf]
        %v293 = vld [vmem:[%s209 + $0x48] sm:$0xf]
        %v294 = vld [vmem:[%s209 + $0x4c] sm:$0xf]
        %v295 = vld [vmem:[%s209 + $0x50] sm:$0xf]
        %v296 = vld [vmem:[%s209 + $0x54] sm:$0xf]
        %v297 = vld [vmem:[%s209 + $0x58] sm:$0xf]
        %v298 = vld [vmem:[%s209 + $0x5c] sm:$0xf]
        %v299 = vld [vmem:[%s209 + $0x60] sm:$0xf]
        %v300 = vld [vmem:[%s209 + $0x64] sm:$0xf]
        %v301 = vld [vmem:[%s209 + $0x68] sm:$0xf]
        %v302 = vld [vmem:[%s209 + $0x6c] sm:$0xf]
        %v303 = vld [vmem:[%s209 + $0x70] sm:$0xf]
        %v304 = vld [vmem:[%s209 + $0x74] sm:$0xf]
        %v305 = vld [vmem:[%s209 + $0x78] sm:$0xf]
        %v306 = vld [vmem:[%s209 + $0x7c] sm:$0xf]
        %v341 = vunpack.c.l.b16 %v241
        %v342 = vunpack.c.h.b16 %v241
        %v343 = vunpack.c.l.b16 %v242
        %v344 = vunpack.c.h.b16 %v242
        %v345 = vunpack.c.l.b16 %v243
        %v346 = vunpack.c.h.b16 %v243
        %v347 = vunpack.c.l.b16 %v244
        %v348 = vunpack.c.h.b16 %v244
        %v349 = vunpack.c.l.b16 %v245
        %v350 = vunpack.c.h.b16 %v245
        %v351 = vunpack.c.l.b16 %v246
        %v352 = vunpack.c.h.b16 %v246
        %v353 = vunpack.c.l.b16 %v247
        %v354 = vunpack.c.h.b16 %v247
        %v355 = vunpack.c.l.b16 %v248
        %v356 = vunpack.c.h.b16 %v248
        %v357 = vunpack.c.l.b16 %v249
        %v358 = vunpack.c.h.b16 %v249
        %v359 = vunpack.c.l.b16 %v250
        %v360 = vunpack.c.h.b16 %v250
        %v361 = vunpack.c.l.b16 %v251
        %v362 = vunpack.c.h.b16 %v251
        %v363 = vunpack.c.l.b16 %v252
        %v364 = vunpack.c.h.b16 %v252
        %v365 = vunpack.c.l.b16 %v253
        %v366 = vunpack.c.h.b16 %v253
        %v367 = vunpack.c.l.b16 %v254
        %v368 = vunpack.c.h.b16 %v254
        %v369 = vunpack.c.l.b16 %v255
        %v370 = vunpack.c.h.b16 %v255
        %v371 = vunpack.c.l.b16 %v256
        %v372 = vunpack.c.h.b16 %v256
        %v373 = vunpack.c.l.b16 %v257
        %v374 = vunpack.c.h.b16 %v257
        %v375 = vunpack.c.l.b16 %v258
        %v376 = vunpack.c.h.b16 %v258
        %v377 = vunpack.c.l.b16 %v259
        %v378 = vunpack.c.h.b16 %v259
        %v379 = vunpack.c.l.b16 %v260
        %v380 = vunpack.c.h.b16 %v260
        %v381 = vunpack.c.l.b16 %v261
        %v382 = vunpack.c.h.b16 %v261
        %v383 = vunpack.c.l.b16 %v262
        %v384 = vunpack.c.h.b16 %v262
        %v385 = vunpack.c.l.b16 %v263
        %v386 = vunpack.c.h.b16 %v263
        %v387 = vunpack.c.l.b16 %v264
        %v388 = vunpack.c.h.b16 %v264
        %v389 = vunpack.c.l.b16 %v265
        %v390 = vunpack.c.h.b16 %v265
        %v391 = vunpack.c.l.b16 %v266
        %v392 = vunpack.c.h.b16 %v266
        %v393 = vunpack.c.l.b16 %v267
        %v394 = vunpack.c.h.b16 %v267
        %v395 = vunpack.c.l.b16 %v268
        %v396 = vunpack.c.h.b16 %v268
        %v397 = vunpack.c.l.b16 %v269
        %v398 = vunpack.c.h.b16 %v269
        %v399 = vunpack.c.l.b16 %v270
        %v400 = vunpack.c.h.b16 %v270
        %v401 = vunpack.c.l.b16 %v271
        %v402 = vunpack.c.h.b16 %v271
        %v403 = vunpack.c.l.b16 %v272
        %v404 = vunpack.c.h.b16 %v272
        %v405 = vunpack.c.l.b16 %v273
        %v406 = vunpack.c.h.b16 %v273
        %v407 = vunpack.c.l.b16 %v274
        %v408 = vunpack.c.h.b16 %v274
        %v409 = vpack.c.b16 %v343, %v341
        %v410 = vpack.c.b16 %v344, %v342
        %v411 = vpack.c.b16 %v347, %v345
        %v412 = vpack.c.b16 %v348, %v346
        %v413 = vpack.c.b16 %v351, %v349
        %v414 = vpack.c.b16 %v352, %v350
        %v415 = vpack.c.b16 %v355, %v353
        %v416 = vpack.c.b16 %v356, %v354
        %v417 = vpack.c.b16 %v359, %v357
        %v418 = vpack.c.b16 %v360, %v358
        %v419 = vpack.c.b16 %v363, %v361
        %v420 = vpack.c.b16 %v364, %v362
        %v421 = vpack.c.b16 %v367, %v365
        %v422 = vpack.c.b16 %v368, %v366
        %v423 = vpack.c.b16 %v371, %v369
        %v424 = vpack.c.b16 %v372, %v370
        %v425 = vpack.c.b16 %v375, %v373
        %v426 = vpack.c.b16 %v376, %v374
        %v427 = vpack.c.b16 %v379, %v377
        %v428 = vpack.c.b16 %v380, %v378
        %v429 = vpack.c.b16 %v383, %v381
        %v430 = vpack.c.b16 %v384, %v382
        %v431 = vpack.c.b16 %v387, %v385
        %v432 = vpack.c.b16 %v388, %v386
        %v433 = vpack.c.b16 %v391, %v389
        %v434 = vpack.c.b16 %v392, %v390
        %v435 = vpack.c.b16 %v395, %v393
        %v436 = vpack.c.b16 %v396, %v394
        %v437 = vpack.c.b16 %v399, %v397
        %v438 = vpack.c.b16 %v400, %v398
        %v439 = vpack.c.b16 %v403, %v401
        %v440 = vpack.c.b16 %v404, %v402
        %v441 = vpack.c.b16 %v407, %v405
        %v442 = vpack.c.b16 %v408, %v406
        %v509 = vunpack.c.l.b16 %v275
        %v510 = vunpack.c.l.b16 %v276
        %v511 = vunpack.c.l.b16 %v277
        %v512 = vunpack.c.l.b16 %v278
        %v513 = vunpack.c.l.b16 %v279
        %v514 = vunpack.c.l.b16 %v280
        %v515 = vunpack.c.l.b16 %v281
        %v516 = vunpack.c.l.b16 %v282
        %v517 = vunpack.c.l.b16 %v283
        %v518 = vunpack.c.l.b16 %v284
        %v519 = vunpack.c.l.b16 %v285
        %v520 = vunpack.c.l.b16 %v286
        %v521 = vunpack.c.l.b16 %v287
        %v522 = vunpack.c.l.b16 %v288
        %v523 = vunpack.c.l.b16 %v289
        %v524 = vunpack.c.l.b16 %v290
        %v525 = vunpack.c.l.b16 %v291
        %v526 = vunpack.c.l.b16 %v292
        %v527 = vunpack.c.l.b16 %v293
        %v528 = vunpack.c.l.b16 %v294
        %v529 = vunpack.c.l.b16 %v295
        %v530 = vunpack.c.l.b16 %v296
        %v531 = vunpack.c.l.b16 %v297
        %v532 = vunpack.c.l.b16 %v298
        %v533 = vunpack.c.l.b16 %v299
        %v534 = vunpack.c.l.b16 %v300
        %v535 = vunpack.c.l.b16 %v301
        %v536 = vunpack.c.l.b16 %v302
        %v537 = vunpack.c.l.b16 %v303
        %v538 = vunpack.c.l.b16 %v304
        %v539 = vunpack.c.l.b16 %v305
        %v540 = vunpack.c.l.b16 %v306
        %v541 = vpack.c.b16 %v510, %v509
        %v542 = vpack.c.b16 %v512, %v511
        %v543 = vpack.c.b16 %v514, %v513
        %v544 = vpack.c.b16 %v516, %v515
        %v545 = vpack.c.b16 %v518, %v517
        %v546 = vpack.c.b16 %v520, %v519
        %v547 = vpack.c.b16 %v522, %v521
        %v548 = vpack.c.b16 %v524, %v523
        %v549 = vpack.c.b16 %v526, %v525
        %v550 = vpack.c.b16 %v528, %v527
        %v551 = vpack.c.b16 %v530, %v529
        %v552 = vpack.c.b16 %v532, %v531
        %v553 = vpack.c.b16 %v534, %v533
        %v554 = vpack.c.b16 %v536, %v535
        %v555 = vpack.c.b16 %v538, %v537
        %v556 = vpack.c.b16 %v540, %v539
        %573 = vmatprep.subr.bf16.mxu0 0
        %574 = vmatpush1.bf16.msra.mxu0 %v541
        %575 = vmatprep.subr.bf16.mxu0 0
        %576 = vmatpush1.bf16.msra.mxu0 %v542
        %577 = vmatprep.subr.bf16.mxu0 0
        %578 = vmatpush1.bf16.msra.mxu0 %v543
        %579 = vmatprep.subr.bf16.mxu0 0
        %580 = vmatpush1.bf16.msra.mxu0 %v544
        %581 = vmatprep.subr.bf16.mxu0 0
        %582 = vmatpush1.bf16.msra.mxu0 %v545
        %583 = vmatprep.subr.bf16.mxu0 0
        %584 = vmatpush1.bf16.msra.mxu0 %v546
        %585 = vmatprep.subr.bf16.mxu0 0
        %586 = vmatpush1.bf16.msra.mxu0 %v547
        %587 = vmatprep.subr.bf16.mxu0 0
        %588 = vmatpush1.bf16.msra.mxu0 %v548
        %589 = vmatprep.subr.bf16.mxu0 0
        %590 = vmatpush1.bf16.msra.mxu0 %v549
        %591 = vmatprep.subr.bf16.mxu0 0
        %592 = vmatpush1.bf16.msra.mxu0 %v550
        %593 = vmatprep.subr.bf16.mxu0 0
        %594 = vmatpush1.bf16.msra.mxu0 %v551
        %595 = vmatprep.subr.bf16.mxu0 0
        %596 = vmatpush1.bf16.msra.mxu0 %v552
        %597 = vmatprep.subr.bf16.mxu0 0
        %598 = vmatpush1.bf16.msra.mxu0 %v553
        %599 = vmatprep.subr.bf16.mxu0 0
        %600 = vmatpush1.bf16.msra.mxu0 %v554
        %601 = vmatprep.subr.bf16.mxu0 0
        %602 = vmatpush1.bf16.msra.mxu0 %v555
        %603 = vmatprep.subr.bf16.mxu0 0
        %604 = vmatpush1.bf16.msra.mxu0 %v556
        %605 = vmatprep.mubr.bf16.mxu0 %v410
        %606 = vmatmul.mubr.bf16.gmra.mrb[0].mxu0 %v409
        %v607 = vpop.f32.mrb[0].mxu0
        %v608 = vadd.f32 0.0, %v607
        %v609 = vpop.f32.mrb[0].mxu0
        %v610 = vpop.f32.mrb[0].mxu0
        %v611 = vadd.f32 0.0, %v610
        %v612 = vpop.f32.mrb[0].mxu0
        %613 = vmatprep.mubr.bf16.mxu0 %v412
        %614 = vmatmul.mubr.bf16.gmra.mrb[0].mxu0 %v411
        %v615 = vpop.f32.mrb[0].mxu0
        %v616 = vadd.f32 0.0, %v615
        %v617 = vpop.f32.mrb[0].mxu0
        %v618 = vpop.f32.mrb[0].mxu0
        %v619 = vadd.f32 0.0, %v618
        %v620 = vpop.f32.mrb[0].mxu0
        %621 = vmatprep.mubr.bf16.mxu0 %v414
        %622 = vmatmul.mubr.bf16.gmra.mrb[0].mxu0 %v413
        %v623 = vpop.f32.mrb[0].mxu0
        %v624 = vadd.f32 0.0, %v623
        %v625 = vpop.f32.mrb[0].mxu0
        %v626 = vpop.f32.mrb[0].mxu0
        %v627 = vadd.f32 0.0, %v626
        %v628 = vpop.f32.mrb[0].mxu0
        %629 = vmatprep.mubr.bf16.mxu0 %v416
        %630 = vmatmul.mubr.bf16.gmra.mrb[0].mxu0 %v415
        %v631 = vpop.f32.mrb[0].mxu0
        %v632 = vadd.f32 0.0, %v631
        %v633 = vpop.f32.mrb[0].mxu0
        %v634 = vpop.f32.mrb[0].mxu0
        %v635 = vadd.f32 0.0, %v634
        %v636 = vpop.f32.mrb[0].mxu0
        %637 = vmatprep.mubr.bf16.mxu0 %v418
        %638 = vmatmul.mubr.bf16.gmra.mrb[0].mxu0 %v417
        %v639 = vpop.f32.mrb[0].mxu0
        %v640 = vadd.f32 0.0, %v639
        %v641 = vpop.f32.mrb[0].mxu0
        %v642 = vpop.f32.mrb[0].mxu0
        %v643 = vadd.f32 0.0, %v642
        %v644 = vpop.f32.mrb[0].mxu0
        %645 = vmatprep.mubr.bf16.mxu0 %v420
        %646 = vmatmul.mubr.bf16.gmra.mrb[0].mxu0 %v419
        %v647 = vpop.f32.mrb[0].mxu0
        %v648 = vadd.f32 0.0, %v647
        %v649 = vpop.f32.mrb[0].mxu0
        %v650 = vpop.f32.mrb[0].mxu0
        %v651 = vadd.f32 0.0, %v650
        %v652 = vpop.f32.mrb[0].mxu0
        %653 = vmatprep.mubr.bf16.mxu0 %v422
        %654 = vmatmul.mubr.bf16.gmra.mrb[0].mxu0 %v421
        %v655 = vpop.f32.mrb[0].mxu0
        %v656 = vadd.f32 0.0, %v655
        %v657 = vpop.f32.mrb[0].mxu0
        %v658 = vpop.f32.mrb[0].mxu0
        %v659 = vadd.f32 0.0, %v658
        %v660 = vpop.f32.mrb[0].mxu0
        %661 = vmatprep.mubr.bf16.mxu0 %v424
        %662 = vmatmul.mubr.bf16.gmra.mrb[0].mxu0 %v423
        %v663 = vpop.f32.mrb[0].mxu0
        %v664 = vadd.f32 0.0, %v663
        %v665 = vpop.f32.mrb[0].mxu0
        %v666 = vpop.f32.mrb[0].mxu0
        %v667 = vadd.f32 0.0, %v666
        %v668 = vpop.f32.mrb[0].mxu0
        %669 = vmatprep.mubr.bf16.mxu0 %v426
        %670 = vmatmul.mubr.bf16.gmra.mrb[0].mxu0 %v425
        %v671 = vpop.f32.mrb[0].mxu0
        %v672 = vadd.f32 0.0, %v671
        %v673 = vpop.f32.mrb[0].mxu0
        %v674 = vpop.f32.mrb[0].mxu0
        %v675 = vadd.f32 0.0, %v674
        %v676 = vpop.f32.mrb[0].mxu0
        %677 = vmatprep.mubr.bf16.mxu0 %v428
        %678 = vmatmul.mubr.bf16.gmra.mrb[0].mxu0 %v427
        %v679 = vpop.f32.mrb[0].mxu0
        %v680 = vadd.f32 0.0, %v679
        %v681 = vpop.f32.mrb[0].mxu0
        %v682 = vpop.f32.mrb[0].mxu0
        %v683 = vadd.f32 0.0, %v682
        %v684 = vpop.f32.mrb[0].mxu0
        %685 = vmatprep.mubr.bf16.mxu0 %v430
        %686 = vmatmul.mubr.bf16.gmra.mrb[0].mxu0 %v429
        %v687 = vpop.f32.mrb[0].mxu0
        %v688 = vadd.f32 0.0, %v687
        %v689 = vpop.f32.mrb[0].mxu0
        %v690 = vpop.f32.mrb[0].mxu0
        %v691 = vadd.f32 0.0, %v690
        %v692 = vpop.f32.mrb[0].mxu0
        %693 = vmatprep.mubr.bf16.mxu0 %v432
        %694 = vmatmul.mubr.bf16.gmra.mrb[0].mxu0 %v431
        %v695 = vpop.f32.mrb[0].mxu0
        %v696 = vadd.f32 0.0, %v695
        %v697 = vpop.f32.mrb[0].mxu0
        %v698 = vpop.f32.mrb[0].mxu0
        %v699 = vadd.f32 0.0, %v698
        %v700 = vpop.f32.mrb[0].mxu0
        %701 = vmatprep.mubr.bf16.mxu0 %v434
        %702 = vmatmul.mubr.bf16.gmra.mrb[0].mxu0 %v433
        %v703 = vpop.f32.mrb[0].mxu0
        %v704 = vadd.f32 0.0, %v703
        %v705 = vpop.f32.mrb[0].mxu0
        %v706 = vpop.f32.mrb[0].mxu0
        %v707 = vadd.f32 0.0, %v706
        %v708 = vpop.f32.mrb[0].mxu0
        %709 = vmatprep.mubr.bf16.mxu0 %v436
        %710 = vmatmul.mubr.bf16.gmra.mrb[0].mxu0 %v435
        %v711 = vpop.f32.mrb[0].mxu0
        %v712 = vadd.f32 0.0, %v711
        %v713 = vpop.f32.mrb[0].mxu0
        %v714 = vpop.f32.mrb[0].mxu0
        %v715 = vadd.f32 0.0, %v714
        %v716 = vpop.f32.mrb[0].mxu0
        %717 = vmatprep.mubr.bf16.mxu0 %v438
        %718 = vmatmul.mubr.bf16.gmra.mrb[0].mxu0 %v437
        %v719 = vpop.f32.mrb[0].mxu0
        %v720 = vadd.f32 0.0, %v719
        %v721 = vpop.f32.mrb[0].mxu0
        %v722 = vpop.f32.mrb[0].mxu0
        %v723 = vadd.f32 0.0, %v722
        %v724 = vpop.f32.mrb[0].mxu0
        %725 = vmatprep.mubr.bf16.mxu0 %v440
        %726 = vmatmul.mubr.bf16.gmra.mrb[0].mxu0 %v439
        %v727 = vpop.f32.mrb[0].mxu0
        %v728 = vadd.f32 0.0, %v727
        %v729 = vpop.f32.mrb[0].mxu0
        %v730 = vpop.f32.mrb[0].mxu0
        %v731 = vadd.f32 0.0, %v730
        %v732 = vpop.f32.mrb[0].mxu0
        %733 = vmatprep.mubr.bf16.mxu0 %v442
        %734 = vmatmul.mubr.bf16.gmra.mrb[0].mxu0 %v441
        %v735 = vpop.f32.mrb[0].mxu0
        %v736 = vadd.f32 0.0, %v735
        %v737 = vpop.f32.mrb[0].mxu0
        %v738 = vpop.f32.mrb[0].mxu0
        %v739 = vadd.f32 0.0, %v738
        %v740 = vpop.f32.mrb[0].mxu0
        %741 = vdwg.mxu0
        %v742 = vmul.f32 %v608, %v608
        %v743 = vmul.f32 %v611, %v611
        %v744 = vmul.f32 %v616, %v616
        %v745 = vmul.f32 %v619, %v619
        %v746 = vmul.f32 %v624, %v624
        %v747 = vmul.f32 %v627, %v627
        %v748 = vmul.f32 %v632, %v632
        %v749 = vmul.f32 %v635, %v635
        %v750 = vmul.f32 %v640, %v640
        %v751 = vmul.f32 %v643, %v643
        %v752 = vmul.f32 %v648, %v648
        %v753 = vmul.f32 %v651, %v651
        %v754 = vmul.f32 %v656, %v656
        %v755 = vmul.f32 %v659, %v659
        %v756 = vmul.f32 %v664, %v664
        %v757 = vmul.f32 %v667, %v667
        %v758 = vmul.f32 %v672, %v672
        %v759 = vmul.f32 %v675, %v675
        %v760 = vmul.f32 %v680, %v680
        %v761 = vmul.f32 %v683, %v683
        %v762 = vmul.f32 %v688, %v688
        %v763 = vmul.f32 %v691, %v691
        %v764 = vmul.f32 %v696, %v696
        %v765 = vmul.f32 %v699, %v699
        %v766 = vmul.f32 %v704, %v704
        %v767 = vmul.f32 %v707, %v707
        %v768 = vmul.f32 %v712, %v712
        %v769 = vmul.f32 %v715, %v715
        %v770 = vmul.f32 %v720, %v720
        %v771 = vmul.f32 %v723, %v723
        %v772 = vmul.f32 %v728, %v728
        %v773 = vmul.f32 %v731, %v731
        %v774 = vmul.f32 %v736, %v736
        %v775 = vmul.f32 %v739, %v739
        %v776 = vadd.f32 %v742, %v759
        %v777 = vadd.f32 %v743, %v760
        %v778 = vadd.f32 %v744, %v761
        %v779 = vadd.f32 %v745, %v762
        %v780 = vadd.f32 %v746, %v763
        %v781 = vadd.f32 %v747, %v764
        %v782 = vadd.f32 %v748, %v765
        %v783 = vadd.f32 %v749, %v766
        %v784 = vadd.f32 %v750, %v767
        %v785 = vadd.f32 %v751, %v768
        %v786 = vadd.f32 %v752, %v769
        %v787 = vadd.f32 %v753, %v770
        %v788 = vadd.f32 %v754, %v771
        %v789 = vadd.f32 %v755, %v772
        %v790 = vadd.f32 %v756, %v773
        %v791 = vadd.f32 %v757, %v774
        %v792 = vadd.f32 %v758, %v775
        %v793 = vld [vmem:[#allocation9] sm:$0xff]
        %v794 = vld [vmem:[#allocation9 + $0x8] sm:$0xff]
        %v795 = vld [vmem:[#allocation9 + $0x10] sm:$0xff]
        %v796 = vld [vmem:[#allocation9 + $0x18] sm:$0xff]
        %v797 = vld [vmem:[#allocation9 + $0x20] sm:$0xff]
        %v798 = vld [vmem:[#allocation9 + $0x28] sm:$0xff]
        %v799 = vld [vmem:[#allocation9 + $0x30] sm:$0xff]
        %v800 = vld [vmem:[#allocation9 + $0x38] sm:$0xff]
        %v801 = vld [vmem:[#allocation9 + $0x40] sm:$0xff]
        %v802 = vld [vmem:[#allocation9 + $0x48] sm:$0xff]
        %v803 = vld [vmem:[#allocation9 + $0x50] sm:$0xff]
        %v804 = vld [vmem:[#allocation9 + $0x58] sm:$0xff]
        %v805 = vld [vmem:[#allocation9 + $0x60] sm:$0xff]
        %v806 = vld [vmem:[#allocation9 + $0x68] sm:$0xff]
        %v807 = vld [vmem:[#allocation9 + $0x70] sm:$0xff]
        %v808 = vld [vmem:[#allocation9 + $0x78] sm:$0xff]
        %vm809 = vcmask 64512
        %v811 = vsel %vm809, %v794, 0
        %v814 = vsel %vm809, %v796, 0
        %v817 = vsel %vm809, %v798, 0
        %v820 = vsel %vm809, %v800, 0
        %v823 = vsel %vm809, %v802, 0
        %v826 = vsel %vm809, %v804, 0
        %v829 = vsel %vm809, %v806, 0
        %v832 = vsel %vm809, %v808, 0
        %834 = vmatprep.subr.mxu0 0.0
        %835 = vmatpush1.msra.mxu0 %v776
        %836 = vmatprep.subr.mxu0 0.0
        %837 = vmatpush1.msra.mxu0 %v777
        %838 = vmatprep.subr.mxu0 0.0
        %839 = vmatpush1.msra.mxu0 %v778
        %840 = vmatprep.subr.mxu0 0.0
        %841 = vmatpush1.msra.mxu0 %v779
        %842 = vmatprep.subr.mxu0 0.0
        %843 = vmatpush1.msra.mxu0 %v780
        %844 = vmatprep.subr.mxu0 0.0
        %845 = vmatpush1.msra.mxu0 %v781
        %846 = vmatprep.subr.mxu0 0.0
        %847 = vmatpush1.msra.mxu0 %v782
        %848 = vmatprep.subr.mxu0 0.0
        %849 = vmatpush1.msra.mxu0 %v783
        %850 = vmatprep.subr.mxu0 0.0
        %851 = vmatpush1.msra.mxu0 %v784
        %852 = vmatprep.subr.mxu0 0.0
        %853 = vmatpush1.msra.mxu0 %v785
        %854 = vmatprep.subr.mxu0 0.0
        %855 = vmatpush1.msra.mxu0 %v786
        %856 = vmatprep.subr.mxu0 0.0
        %857 = vmatpush1.msra.mxu0 %v787
        %858 = vmatprep.subr.mxu0 0.0
        %859 = vmatpush1.msra.mxu0 %v788
        %860 = vmatprep.subr.mxu0 0.0
        %861 = vmatpush1.msra.mxu0 %v789
        %862 = vmatprep.subr.mxu0 0.0
        %863 = vmatpush1.msra.mxu0 %v790
        %864 = vmatprep.subr.mxu0 0.0
        %865 = vmatpush1.msra.mxu0 %v791
        %866 = vmatprep.subr.mxu0 0.0
        %867 = vmatpush1.msra.mxu0 %v792
        %868 = vmatprep.subr.mxu0 0.0
        %869 = vmatpush1.msra.mxu0 0.0
        %870 = vmatprep.subr.mxu0 0.0
        %871 = vmatpush1.msra.mxu0 0.0
        %872 = vmatprep.subr.mxu0 0.0
        %873 = vmatpush1.msra.mxu0 0.0
        %874 = vmatprep.subr.mxu0 0.0
        %875 = vmatpush1.msra.mxu0 0.0
        %876 = vmatprep.subr.mxu0 0.0
        %877 = vmatpush1.msra.mxu0 0.0
        %878 = vmatprep.subr.mxu0 0.0
        %879 = vmatpush1.msra.mxu0 0.0
        %880 = vmatprep.subr.mxu0 0.0
        %881 = vmatpush1.msra.mxu0 0.0
        %882 = vmatprep.subr.mxu0 0.0
        %883 = vmatpush1.msra.mxu0 0.0
        %884 = vmatprep.subr.mxu0 0.0
        %885 = vmatpush1.msra.mxu0 0.0
        %886 = vmatprep.subr.mxu0 0.0
        %887 = vmatpush1.msra.mxu0 0.0
        %888 = vmatprep.subr.mxu0 0.0
        %889 = vmatpush1.msra.mxu0 0.0
        %890 = vmatprep.subr.mxu0 0.0
        %891 = vmatpush1.msra.mxu0 0.0
        %892 = vmatprep.subr.mxu0 0.0
        %893 = vmatpush1.msra.mxu0 0.0
        %894 = vmatprep.subr.mxu0 0.0
        %895 = vmatpush1.msra.mxu0 0.0
        %896 = vmatprep.subr.mxu0 0.0
        %897 = vmatpush1.msra.mxu0 0.0
        %898 = vmatprep.mubr.f32.mxu0 %v811
        %899 = vmatmul.mubr.f32.gmra.mrb[0].mxu0 %v793
        %v900 = vpop.f32.mrb[0].mxu0
        %v901 = vadd.f32 1e-20, %v900
        %v902 = vpop.f32.mrb[0].mxu0
        %903 = vmatprep.mubr.f32.mxu0 %v814
        %904 = vmatmul.mubr.f32.gmra.mrb[0].mxu0 %v795
        %v905 = vpop.f32.mrb[0].mxu0
        %v906 = vadd.f32 1e-20, %v905
        %v907 = vpop.f32.mrb[0].mxu0
        %908 = vmatprep.mubr.f32.mxu0 %v817
        %909 = vmatmul.mubr.f32.gmra.mrb[0].mxu0 %v797
        %v910 = vpop.f32.mrb[0].mxu0
        %v911 = vadd.f32 1e-20, %v910
        %v912 = vpop.f32.mrb[0].mxu0
        %913 = vmatprep.mubr.f32.mxu0 %v820
        %914 = vmatmul.mubr.f32.gmra.mrb[0].mxu0 %v799
        %v915 = vpop.f32.mrb[0].mxu0
        %v916 = vadd.f32 1e-20, %v915
        %v917 = vpop.f32.mrb[0].mxu0
        %918 = vmatprep.mubr.f32.mxu0 %v823
        %919 = vmatmul.mubr.f32.gmra.mrb[0].mxu0 %v801
        %v920 = vpop.f32.mrb[0].mxu0
        %v921 = vadd.f32 1e-20, %v920
        %v922 = vpop.f32.mrb[0].mxu0
        %923 = vmatprep.mubr.f32.mxu0 %v826
        %924 = vmatmul.mubr.f32.gmra.mrb[0].mxu0 %v803
        %v925 = vpop.f32.mrb[0].mxu0
        %v926 = vadd.f32 1e-20, %v925
        %v927 = vpop.f32.mrb[0].mxu0
        %928 = vmatprep.mubr.f32.mxu0 %v829
        %929 = vmatmul.mubr.f32.gmra.mrb[0].mxu0 %v805
        %v930 = vpop.f32.mrb[0].mxu0
        %v931 = vadd.f32 1e-20, %v930
        %v932 = vpop.f32.mrb[0].mxu0
        %933 = vmatprep.mubr.f32.mxu0 %v832
        %934 = vmatmul.mubr.f32.gmra.mrb[0].mxu0 %v807
        %v935 = vpop.f32.mrb[0].mxu0
        %v936 = vadd.f32 1e-20, %v935
        %v937 = vpop.f32.mrb[0].mxu0
        %938 = vdwg.mxu0
        %v939 = vlog2.pop %v901
        %v940 = vmul.f32 %v939, 0.6931472
        %v941 = vlog2.pop %v906
        %v942 = vmul.f32 %v941, 0.6931472
        %v943 = vlog2.pop %v911
        %v944 = vmul.f32 %v943, 0.6931472
        %v945 = vlog2.pop %v916
        %v946 = vmul.f32 %v945, 0.6931472
        %v947 = vlog2.pop %v921
        %v948 = vmul.f32 %v947, 0.6931472
        %v949 = vlog2.pop %v926
        %v950 = vmul.f32 %v949, 0.6931472
        %v951 = vlog2.pop %v931
        %v952 = vmul.f32 %v951, 0.6931472
        %v953 = vlog2.pop %v936
        %v954 = vmul.f32 %v953, 0.6931472
        %s955 = smul.u32 %s31, 128
        %v956 = vlaneseq
        %v957 = vand.u32 %v956, 127
        %v958 = vstv %s955
        %v959 = vadd.s32 %v958, %v957
        %s960 = sld [smem:[#allocation3 + %s30]]
        %v961 = vstv %s960
        %vm962 = vcmp.ge.s32.totalorder %v959, %v961
        %v963 = vsel %vm962, 0.0, %v940
        %v964 = vsel %vm962, 0.0, %v942
        %v965 = vsel %vm962, 0.0, %v944
        %v966 = vsel %vm962, 0.0, %v946
        %v967 = vsel %vm962, 0.0, %v948
        %v968 = vsel %vm962, 0.0, %v950
        %v969 = vsel %vm962, 0.0, %v952
        %v970 = vsel %vm962, 0.0, %v954
        %971 = vst [vmem:[%s239] sm:$0xff] %v963
        %972 = vst [vmem:[%s239 + $0x8] sm:$0xff] %v964
        %973 = vst [vmem:[%s239 + $0x10] sm:$0xff] %v965
        %974 = vst [vmem:[%s239 + $0x18] sm:$0xff] %v966
        %975 = vst [vmem:[%s239 + $0x20] sm:$0xff] %v967
        %976 = vst [vmem:[%s239 + $0x28] sm:$0xff] %v968
        %977 = vst [vmem:[%s239 + $0x30] sm:$0xff] %v969
        %978 = vst [vmem:[%s239 + $0x38] sm:$0xff] %v970
        %s979 = sand.u32 %s118, 1
        %s980 = scalar_lea.sflag [#allocation6], %s979
        %s981 = sand.u32 %s118, 1
        %s982 = smul.addr %s981, 64
        %s983 = scalar_lea.vmem [#allocation10], %s982
        // Predicated region
        $region45: #{tpu_custom_call.1} parent=31 // pred_check
          %p984 = pneg %p128
        $region46: #{tpu_custom_call.1} parent=31 // pred_check_branch
          %986 = sbr.rel (%p984) target = $region48
        $region47: #{tpu_custom_call.1} parent=31 // pred_region
          %s988 = ssub.s32 1024, 1024
          %989 = vsyncadd %s980, %s988
          %s990 = smul.addr %s30, 8
          %s991 = sadd.s32 %s31, %s990
          %s992 = smul.addr %s991, 128
          %s993 = scalar_lea.hbm %s4, %s992
          %s994 = sshll.u32 %s983, 4
          %s995 = int_to_ptr.vmem [resolvable:$true] %s994
          %1000 = dma.vmem_to_hbm [thread:$0]  %s995, 1024, %s993, %s980, 128, 128, 8
        $region48: #{tpu_custom_call.1} parent=31 // pred_fallthru
          _
      $region32: #{tpu_custom_call.1} parent=5 // pred_fallthru
        _
      %p1001 = scmp.le.s32.totalorder 2, %s21
      // Predicated region
      $region49: #{tpu_custom_call.1} parent=5 // pred_check
        %p1002 = pneg %p1001
      $region50: #{tpu_custom_call.1} parent=5 // pred_check_branch
        %1004 = sbr.rel (%p1002) target = $region52
      $region51: #{tpu_custom_call.1} parent=5 // pred_region
        %s1005 = ssub.s32 %s21, 2
        // Predicated region
        $region53: #{tpu_custom_call.1} parent=51 // pred_check
          %p1006 = pneg %p134
        $region54: #{tpu_custom_call.1} parent=51 // pred_check_branch
          %1008 = sbr.rel (%p1006) target = $region56
        $region55: #{tpu_custom_call.1} parent=51 // pred_region
          %s1009 = sand.u32 %s119, 1
          %s1010 = scalar_lea.sflag [#allocation6], %s1009
          %s1011 = sand.u32 %s119, 1
          %s1012 = smul.addr %s1011, 64
          %s1013 = scalar_lea.vmem [#allocation10], %s1012
          %1014 = dma.done %s1010, 1024
        $region56: #{tpu_custom_call.1} parent=51 // pred_fallthru
          _
      $region52: #{tpu_custom_call.1} parent=5 // pred_fallthru
        _
    $region6: #{tpu_custom_call.1} parent=1 // loop_footer
      %s25 = sadd.s32 1, %s21
    $region7: #{tpu_custom_call.1} parent=1 // loop_footer_branch
      %20 = sbr.rel target = $region3
    $region8: #{tpu_custom_call.1} parent=1 // loop_exit
      _
    %1015 = vsyncpa [#allocation5], 1
    %s1016 = scalar_lea.sflag [#allocation5], 1
    %1017 = vsyncpa %s1016, 1
    %1018 = vsyncpa [#allocation8], 1
    %1019 = vsyncpa [#allocation6], 1
    %s1020 = scalar_lea.sflag [#allocation6], 1
    %1021 = vsyncpa %s1020, 1

</llo_original>
